<compile_context>
chip_gen: v7x
topology: tpu7x:2x2x1
jax: 0.10.0
libtpu: 0.0.40
codegen_flags: <defaults>
</compile_context>

<pallas_src>
import jax
import jax.numpy as jnp
from jax.experimental import pallas as pl
from jax.experimental.pallas import tpu as pltpu


def _mine_kernel(z_ref, y_ref, w1z_ref, w1y_ref, b1_ref, w2_ref, b2_ref, o_ref):
    # fc1: h = z @ W1z + y @ W1y + b1   (weights pre-transposed to [in, hidden])
    h = jnp.dot(z_ref[...], w1z_ref[...], preferred_element_type=jnp.float32)
    if y_ref.shape[-1] == 1:
        # dim_y == 1: [TB,1] @ [1,H] is an outer product; do it as a VPU
        # broadcast multiply instead of a second MXU push.
        h = h + y_ref[...] * w1y_ref[...]
    else:
        h = h + jnp.dot(y_ref[...], w1y_ref[...], preferred_element_type=jnp.float32)
    h = jnp.maximum(h + b1_ref[...], 0.0)

    # fc2 has a single output column: VPU multiply + cross-lane (XLU) reduce is
    # cheaper than an N=1 matmul.  b2 is a scalar read from SMEM.
    out = jnp.sum(h * w2_ref[...], axis=-1, keepdims=True) + b2_ref[0]
    o_ref[...] = out.astype(o_ref.dtype)


def prepare_mine_params(w1, b1, w2, b2, dim_z):
    """One-time parameter repack (call OUTSIDE the per-step hot path).

    w1: [hidden, dim_z + dim_y]  (torch nn.Linear layout)
    b1: [hidden]
    w2: [1, hidden]
    b2: [1]
    """
    H = w1.shape[0]
    w1z = jnp.transpose(w1[:, :dim_z])   # [dim_z, H]
    w1y = jnp.transpose(w1[:, dim_z:])   # [dim_y, H]
    b1r = b1.reshape(1, H)               # [1, H]
    w2r = w2.reshape(1, H)               # [1, H]  (fc2 weight row)
    b2r = b2.reshape(1)                  # [1]     -> SMEM scalar
    return w1z, w1y, b1r, w2r, b2r


def mine_forward(z, y, params, *, batch_tile=512):
    """Pallas MINE forward.  z: [B, dim_z], y: [B, dim_y] -> [B, 1] float32."""
    w1z, w1y, b1r, w2r, b2r = params
    B, dim_z = z.shape
    dim_y = y.shape[1]
    H = w1z.shape[1]

    # One full block for small B; stream 512-row tiles (f32, 8-divisible) for
    # training-scale batches while the (tiny) weights stay VMEM-resident.
    TB = B if B <= batch_tile else batch_tile
    nb = pl.cdiv(B, TB)

    return pl.pallas_call(
        _mine_kernel,
        out_shape=jax.ShapeDtypeStruct((B, 1), jnp.float32),
        grid=(nb,),
        in_specs=[
            pl.BlockSpec((TB, dim_z), lambda i: (i, 0)),        # z: streamed per tile
            pl.BlockSpec((TB, dim_y), lambda i: (i, 0)),        # y: streamed per tile
            pl.BlockSpec((dim_z, H), lambda i: (0, 0)),         # W1z^T: resident
            pl.BlockSpec((dim_y, H), lambda i: (0, 0)),         # W1y^T: resident
            pl.BlockSpec((1, H), lambda i: (0, 0)),             # b1: resident
            pl.BlockSpec((1, H), lambda i: (0, 0)),             # fc2 row: resident
            pl.BlockSpec(memory_space=pltpu.MemorySpace.SMEM),  # b2 scalar in SMEM
        ],
        out_specs=pl.BlockSpec((TB, 1), lambda i: (i, 0)),
        compiler_params=pltpu.CompilerParams(
            # Harmless on 1-TC chips; lets v7x shard the batch grid over 2 TCs.
            dimension_semantics=("parallel",),
        ),
    )(z, y, w1z, w1y, b1r, w2r, b2r)


if __name__ == "__main__":
    # Module config (small, consistent with MINE(dim_z, dim_y=1, hidden_size)).
    dim_z, dim_y, hidden = 8, 1, 32
    batch = 16

    key = jax.random.PRNGKey(0)
    kz, ky, kw1, kb1, kw2, kb2 = jax.random.split(key, 6)

    z = jax.random.normal(kz, (batch, dim_z), dtype=jnp.float32)
    y = jax.random.normal(ky, (batch, dim_y), dtype=jnp.float32)

    # Parameters in torch nn.Linear layout.
    D = dim_z + dim_y
    w1 = jax.random.normal(kw1, (hidden, D), dtype=jnp.float32) * 0.1
    b1 = jax.random.normal(kb1, (hidden,), dtype=jnp.float32) * 0.1
    w2 = jax.random.normal(kw2, (1, hidden), dtype=jnp.float32) * 0.1
    b2 = jax.random.normal(kb2, (1,), dtype=jnp.float32) * 0.1

    # One-time repack (outside the per-call hot path).
    params = prepare_mine_params(w1, b1, w2, b2, dim_z)

    out = mine_forward(z, y, params)
    out = jax.block_until_ready(out)

    # Pure-JAX reference check (mirrors the PyTorch forward exactly).
    xy = jnp.concatenate([z, y], axis=1)
    ref = jnp.maximum(xy @ w1.T + b1, 0.0) @ w2.T + b2
    assert out.shape == (batch, 1)
    assert jnp.allclose(out, ref, atol=1e-5, rtol=1e-5)

    print("KERNEL_OK")
</pallas_src>

<mosaic_0001>
module attributes {stable_mosaic.version = 11 : i64} {
  func.func @_mine_kernel(%arg0: i32, %arg1: memref<16x8xf32, #tpu.memory_space<vmem>>, %arg2: memref<16x1xf32, #tpu.memory_space<vmem>>, %arg3: memref<8x32xf32, #tpu.memory_space<vmem>>, %arg4: memref<1x32xf32, #tpu.memory_space<vmem>>, %arg5: memref<1x32xf32, #tpu.memory_space<vmem>>, %arg6: memref<1x32xf32, #tpu.memory_space<vmem>>, %arg7: memref<1xf32, #tpu.memory_space<smem>>, %arg8: memref<16x1xf32, #tpu.memory_space<vmem>>) attributes {dimension_semantics = [#tpu.dimension_semantics<parallel>], iteration_bounds = array<i64: 1>, scalar_prefetch = 0 : i64, scratch_operands = 0 : i64, tpu.core_type = #tpu.core_type<tc>, window_params = [{transform_indices = @transform_0, window_bounds = array<i64: 16, 8>}, {transform_indices = @transform_1, window_bounds = array<i64: 16, 1>}, {pipeline_mode = #tpu.pipeline_mode<synchronous>, transform_indices = @transform_2, window_bounds = array<i64: 8, 32>}, {pipeline_mode = #tpu.pipeline_mode<synchronous>, transform_indices = @transform_3, window_bounds = array<i64: 1, 32>}, {pipeline_mode = #tpu.pipeline_mode<synchronous>, transform_indices = @transform_4, window_bounds = array<i64: 1, 32>}, {pipeline_mode = #tpu.pipeline_mode<synchronous>, transform_indices = @transform_5, window_bounds = array<i64: 1, 32>}, {transform_indices = @transform_6, window_bounds = array<i64: 1>}, {transform_indices = @transform_7, window_bounds = array<i64: 16, 1>}]} {
    %c0 = arith.constant 0 : index
    %c0_0 = arith.constant 0 : index
    %0 = vector.load %arg1[%c0, %c0_0] : memref<16x8xf32, #tpu.memory_space<vmem>>, vector<16x8xf32>
    %c0_1 = arith.constant 0 : index
    %c0_2 = arith.constant 0 : index
    %1 = vector.load %arg3[%c0_1, %c0_2] : memref<8x32xf32, #tpu.memory_space<vmem>>, vector<8x32xf32>
    %cst = arith.constant dense<0.000000e+00> : vector<16x32xf32>
    %2 = tpu.matmul %0, %1, %cst {dimension_numbers = #tpu.dot_dimension_numbers<[1], [0], [0], [1], [0, 0, 1, 1], [], []>} : vector<16x8xf32>, vector<8x32xf32>, vector<16x32xf32> -> vector<16x32xf32>
    %c0_3 = arith.constant 0 : index
    %c0_4 = arith.constant 0 : index
    %3 = vector.load %arg2[%c0_3, %c0_4] : memref<16x1xf32, #tpu.memory_space<vmem>>, vector<16x1xf32>
    %c0_5 = arith.constant 0 : index
    %c0_6 = arith.constant 0 : index
    %4 = vector.load %arg4[%c0_5, %c0_6] : memref<1x32xf32, #tpu.memory_space<vmem>>, vector<1x32xf32>
    %5 = vector.broadcast %3 : vector<16x1xf32> to vector<16x32xf32>
    %6 = vector.broadcast %4 : vector<1x32xf32> to vector<16x32xf32>
    %7 = arith.mulf %5, %6 : vector<16x32xf32>
    %8 = arith.addf %2, %7 : vector<16x32xf32>
    %c0_7 = arith.constant 0 : index
    %c0_8 = arith.constant 0 : index
    %9 = vector.load %arg5[%c0_7, %c0_8] : memref<1x32xf32, #tpu.memory_space<vmem>>, vector<1x32xf32>
    %10 = vector.broadcast %9 : vector<1x32xf32> to vector<16x32xf32>
    %11 = arith.addf %8, %10 : vector<16x32xf32>
    %cst_9 = arith.constant 0.000000e+00 : f32
    %12 = vector.broadcast %cst_9 : f32 to vector<16x32xf32>
    %13 = arith.maximumf %11, %12 : vector<16x32xf32>
    %c0_10 = arith.constant 0 : index
    %c0_11 = arith.constant 0 : index
    %14 = vector.load %arg6[%c0_10, %c0_11] : memref<1x32xf32, #tpu.memory_space<vmem>>, vector<1x32xf32>
    %15 = vector.broadcast %14 : vector<1x32xf32> to vector<16x32xf32>
    %16 = arith.mulf %13, %15 : vector<16x32xf32>
    %cst_12 = arith.constant dense<0.000000e+00> : vector<16xf32>
    %17 = vector.multi_reduction <add>, %16, %cst_12 [1] : vector<16x32xf32> to vector<16xf32>
    %18 = vector.shape_cast %17 : vector<16xf32> to vector<16x1xf32>
    %c0_13 = arith.constant 0 : index
    %19 = memref.load %arg7[%c0_13] : memref<1xf32, #tpu.memory_space<smem>>
    %20 = vector.broadcast %19 : f32 to vector<16x1xf32>
    %21 = arith.addf %18, %20 : vector<16x1xf32>
    %c0_14 = arith.constant 0 : index
    %c0_15 = arith.constant 0 : index
    %22 = vector.load %arg8[%c0_14, %c0_15] : memref<16x1xf32, #tpu.memory_space<vmem>>, vector<16x1xf32>
    tpu.vector_store %arg8[%c0_14, %c0_15], %21 {strides = array<i32>} : memref<16x1xf32, #tpu.memory_space<vmem>>, vector<16x1xf32>,
    return
  }
  func.func @transform_0(%arg0: i32) -> (i32, i32) {
    %c0_i32 = arith.constant 0 : i32
    %c0_i32_0 = arith.constant 0 : i32
    return %arg0, %c0_i32 : i32, i32
  }
  func.func @transform_1(%arg0: i32) -> (i32, i32) {
    %c0_i32 = arith.constant 0 : i32
    %c0_i32_0 = arith.constant 0 : i32
    return %arg0, %c0_i32 : i32, i32
  }
  func.func @transform_2(%arg0: i32) -> (i32, i32) {
    %c0_i32 = arith.constant 0 : i32
    %c0_i32_0 = arith.constant 0 : i32
    %c0_i32_1 = arith.constant 0 : i32
    return %c0_i32, %c0_i32_0 : i32, i32
  }
  func.func @transform_3(%arg0: i32) -> (i32, i32) {
    %c0_i32 = arith.constant 0 : i32
    %c0_i32_0 = arith.constant 0 : i32
    %c0_i32_1 = arith.constant 0 : i32
    return %c0_i32, %c0_i32_0 : i32, i32
  }
  func.func @transform_4(%arg0: i32) -> (i32, i32) {
    %c0_i32 = arith.constant 0 : i32
    %c0_i32_0 = arith.constant 0 : i32
    %c0_i32_1 = arith.constant 0 : i32
    return %c0_i32, %c0_i32_0 : i32, i32
  }
  func.func @transform_5(%arg0: i32) -> (i32, i32) {
    %c0_i32 = arith.constant 0 : i32
    %c0_i32_0 = arith.constant 0 : i32
    %c0_i32_1 = arith.constant 0 : i32
    return %c0_i32, %c0_i32_0 : i32, i32
  }
  func.func @transform_6(%arg0: i32) -> i32 {
    %c0_i32 = arith.constant 0 : i32
    %c0_i32_0 = arith.constant 0 : i32
    return %c0_i32 : i32
  }
  func.func @transform_7(%arg0: i32) -> (i32, i32) {
    %c0_i32 = arith.constant 0 : i32
    %c0_i32_0 = arith.constant 0 : i32
    return %arg0, %c0_i32 : i32, i32
  }
}

</mosaic_0001>

<llo_original>
// kernel: tpu_custom_call.1
$region0: #{tpu_custom_call.1}
  #allocation0 [shape = 'u32[]', space=smem, size = 0x4, offset = 0x4, fixed_abs, tag = 'smem constant byte address 0x4 - core index']
  #allocation1 [shape = 'u32[144,128]{1,0:T(1,128)}', space=vmem, size = 0x12000, scoped, tag = 'internal scratch']
  #allocation2 [shape = 'f32[1]{0:T(128)S(6)}', space=smem, size = 0x200, scoped, tag = 'scoped memory for tpu_custom_call.1']
  %s0 = inlined_call_operand.vmem [shape: f32[16,8], index: 0, kind: input, shape index: {}]
  %s1 = inlined_call_operand.vmem [shape: f32[16,1], index: 1, kind: input, shape index: {}]
  %s2 = inlined_call_operand.vmem [shape: f32[8,32], index: 2, kind: input, shape index: {}]
  %s3 = inlined_call_operand.vmem [shape: f32[1,32], index: 3, kind: input, shape index: {}]
  %s4 = inlined_call_operand.vmem [shape: f32[1,32], index: 4, kind: input, shape index: {}]
  %s5 = inlined_call_operand.vmem [shape: f32[1,32], index: 5, kind: input, shape index: {}]
  %s6 = inlined_call_operand.<no memory space> [shape: f32[1], index: 6, kind: input, shape index: {}]
  %s7 = inlined_call_operand.vmem [shape: f32[16,1], index: 7, kind: output, shape index: {}]
  %s8 = sld [smem:[#allocation0]]
  $region38: #{tpu_custom_call.1} parent=0
    _
  %s10 = ssub.s32 1, %s8
  %s11 = scalar_select 0, %s10, %s8
  %12 = sst [smem:[#allocation2]] %s6
  // Predicated region
  $region2: #{tpu_custom_call.1} parent=0 // pred_check
    _
  $region3: #{tpu_custom_call.1} parent=0 // pred_check_branch
    %14 = sbr.rel (0) target = $region5
  $region4: #{tpu_custom_call.1} parent=0 // pred_region
    _
  $region5: #{tpu_custom_call.1} parent=0 // pred_fallthru
    _
  // Predicated region
  $region6: #{tpu_custom_call.1} parent=0 // pred_check
    _
  $region7: #{tpu_custom_call.1} parent=0 // pred_check_branch
    %16 = sbr.rel (0) target = $region9
  $region8: #{tpu_custom_call.1} parent=0 // pred_region
    _
  $region9: #{tpu_custom_call.1} parent=0 // pred_fallthru
    _
  // Predicated region
  $region10: #{tpu_custom_call.1} parent=0 // pred_check
    _
  $region11: #{tpu_custom_call.1} parent=0 // pred_check_branch
    %18 = sbr.rel (0) target = $region13
  $region12: #{tpu_custom_call.1} parent=0 // pred_region
    _
  $region13: #{tpu_custom_call.1} parent=0 // pred_fallthru
    _
  // Predicated region
  $region14: #{tpu_custom_call.1} parent=0 // pred_check
    _
  $region15: #{tpu_custom_call.1} parent=0 // pred_check_branch
    %20 = sbr.rel (0) target = $region17
  $region16: #{tpu_custom_call.1} parent=0 // pred_region
    _
  $region17: #{tpu_custom_call.1} parent=0 // pred_fallthru
    _
  // Predicated region
  $region18: #{tpu_custom_call.1} parent=0 // pred_check
    _
  $region19: #{tpu_custom_call.1} parent=0 // pred_check_branch
    %22 = sbr.rel (0) target = $region21
  $region20: #{tpu_custom_call.1} parent=0 // pred_region
    _
  $region21: #{tpu_custom_call.1} parent=0 // pred_fallthru
    _
  // Predicated region
  $region22: #{tpu_custom_call.1} parent=0 // pred_check
    _
  $region23: #{tpu_custom_call.1} parent=0 // pred_check_branch
    %24 = sbr.rel (0) target = $region25
  $region24: #{tpu_custom_call.1} parent=0 // pred_region
    _
  $region25: #{tpu_custom_call.1} parent=0 // pred_fallthru
    _
  // Predicated region
  $region26: #{tpu_custom_call.1} parent=0 // pred_check
    _
  $region27: #{tpu_custom_call.1} parent=0 // pred_check_branch
    %26 = sbr.rel (0) target = $region29
  $region28: #{tpu_custom_call.1} parent=0 // pred_region
    _
  $region29: #{tpu_custom_call.1} parent=0 // pred_fallthru
    _
  %v27 = vld [vmem:[%s0] sm:$0xff]
  %v28 = vld [vmem:[%s0 + $0x8] sm:$0xff]
  %v29 = vld [vmem:[%s2] sm:$0xff]
  %v30 = vld [vmem:[%s1] sm:$0xff]
  %v31 = vld [vmem:[%s1 + $0x8] sm:$0xff]
  %v32 = vld [vmem:[%s3] sm:$0x1]
  %34 = vset.pattern.permute.xlu0 0
  %35 = vperm.xlu0 %34, %v30
  %v36 = vpop.permute.xlu0 %35
  %39 = vset.pattern.permute.xlu0 0
  %40 = vperm.xlu0 %39, %v31
  %v41 = vpop.permute.xlu0 %40
  %v44 = vlaneseq
  %v45 = vshrl.u32 %v44, 7
  %v46 = vsub.s32 0, %v45
  %v47 = vrot.slane %v32, %v46
  %v49 = vmul.f32 %v36, %v47
  %v50 = vmul.f32 %v41, %v47
  %vm51 = vcmask 64512
  %v53 = vsel %vm51, %v27, 0
  %v56 = vsel %vm51, %v28, 0
  %58 = vmatprep.subr.mxu0 0.0
  %59 = vmatpush1.msra.mxu0 %v29
  %60 = vmatprep.subr.mxu0 0.0
  %61 = vmatpush1.msra.mxu0 0.0
  %62 = vmatprep.subr.mxu0 0.0
  %63 = vmatpush1.msra.mxu0 0.0
  %64 = vmatprep.subr.mxu0 0.0
  %65 = vmatpush1.msra.mxu0 0.0
  %66 = vmatprep.subr.mxu0 0.0
  %67 = vmatpush1.msra.mxu0 0.0
  %68 = vmatprep.subr.mxu0 0.0
  %69 = vmatpush1.msra.mxu0 0.0
  %70 = vmatprep.subr.mxu0 0.0
  %71 = vmatpush1.msra.mxu0 0.0
  %72 = vmatprep.subr.mxu0 0.0
  %73 = vmatpush1.msra.mxu0 0.0
  %74 = vmatprep.subr.mxu0 0.0
  %75 = vmatpush1.msra.mxu0 0.0
  %76 = vmatprep.subr.mxu0 0.0
  %77 = vmatpush1.msra.mxu0 0.0
  %78 = vmatprep.subr.mxu0 0.0
  %79 = vmatpush1.msra.mxu0 0.0
  %80 = vmatprep.subr.mxu0 0.0
  %81 = vmatpush1.msra.mxu0 0.0
  %82 = vmatprep.subr.mxu0 0.0
  %83 = vmatpush1.msra.mxu0 0.0
  %84 = vmatprep.subr.mxu0 0.0
  %85 = vmatpush1.msra.mxu0 0.0
  %86 = vmatprep.subr.mxu0 0.0
  %87 = vmatpush1.msra.mxu0 0.0
  %88 = vmatprep.subr.mxu0 0.0
  %89 = vmatpush1.msra.mxu0 0.0
  %90 = vmatprep.subr.mxu0 0.0
  %91 = vmatpush1.msra.mxu0 0.0
  %92 = vmatprep.subr.mxu0 0.0
  %93 = vmatpush1.msra.mxu0 0.0
  %94 = vmatprep.subr.mxu0 0.0
  %95 = vmatpush1.msra.mxu0 0.0
  %96 = vmatprep.subr.mxu0 0.0
  %97 = vmatpush1.msra.mxu0 0.0
  %98 = vmatprep.subr.mxu0 0.0
  %99 = vmatpush1.msra.mxu0 0.0
  %100 = vmatprep.subr.mxu0 0.0
  %101 = vmatpush1.msra.mxu0 0.0
  %102 = vmatprep.subr.mxu0 0.0
  %103 = vmatpush1.msra.mxu0 0.0
  %104 = vmatprep.subr.mxu0 0.0
  %105 = vmatpush1.msra.mxu0 0.0
  %106 = vmatprep.subr.mxu0 0.0
  %107 = vmatpush1.msra.mxu0 0.0
  %108 = vmatprep.subr.mxu0 0.0
  %109 = vmatpush1.msra.mxu0 0.0
  %110 = vmatprep.subr.mxu0 0.0
  %111 = vmatpush1.msra.mxu0 0.0
  %112 = vmatprep.subr.mxu0 0.0
  %113 = vmatpush1.msra.mxu0 0.0
  %114 = vmatprep.subr.mxu0 0.0
  %115 = vmatpush1.msra.mxu0 0.0
  %116 = vmatprep.subr.mxu0 0.0
  %117 = vmatpush1.msra.mxu0 0.0
  %118 = vmatprep.subr.mxu0 0.0
  %119 = vmatpush1.msra.mxu0 0.0
  %120 = vmatprep.subr.mxu0 0.0
  %121 = vmatpush1.msra.mxu0 0.0
  %122 = vmatprep.mubr.f32.mxu0 0.0
  %123 = vmatmul.mubr.f32.gmra.mrb[0].mxu0 %v53
  %v124 = vpop.f32.mrb[0].mxu0
  %v125 = vadd.f32 %v49, %v124
  %v126 = vpop.f32.mrb[0].mxu0
  %127 = vmatprep.mubr.f32.mxu0 0.0
  %128 = vmatmul.mubr.f32.gmra.mrb[0].mxu0 %v56
  %v129 = vpop.f32.mrb[0].mxu0
  %v130 = vadd.f32 %v50, %v129
  %v131 = vpop.f32.mrb[0].mxu0
  %132 = vdwg.mxu0
  %v133 = vld [vmem:[%s4] sm:$0x1]
  %v135 = vlaneseq
  %v136 = vshrl.u32 %v135, 7
  %v137 = vsub.s32 0, %v136
  %v138 = vrot.slane %v133, %v137
  %v140 = vadd.f32 %v125, %v138
  %v141 = vadd.f32 %v130, %v138
  %v142 = vmax.f32 %v140, 0.0
  %v143 = vmax.f32 %v141, 0.0
  %v144 = vld [vmem:[%s5] sm:$0x1]
  %v146 = vlaneseq
  %v147 = vshrl.u32 %v146, 7
  %v148 = vsub.s32 0, %v147
  %v149 = vrot.slane %v144, %v148
  %v151 = vmul.f32 %v142, %v149
  %v152 = vmul.f32 %v143, %v149
  %vm153 = vcmask 261120
  %v154 = vsel %vm153, %v151, 0.0
  %155 = vadd.xlane.f32.xlu0 %v154
  %v156 = vpop.xlane.xlu0 %155
  %v157 = vsel %vm153, %v152, 0.0
  %158 = vadd.xlane.f32.xlu0 %v157
  %v159 = vpop.xlane.xlu0 %158
  %s160 = sld [smem:[#allocation2]]
  %v161 = vstv %s160
  %v162 = vadd.f32 %v156, %v161
  %v163 = vadd.f32 %v159, %v161
  %vm164 = vcmask 7168
  %165 = vst.msk [vmem:[%s7] sm:$0xff] %vm164, %v162
  %166 = vst.msk [vmem:[%s7 + $0x8] sm:$0xff] %vm164, %v163
  // Predicated region
  $region30: #{tpu_custom_call.1} parent=0 // pred_check
    _
  $region31: #{tpu_custom_call.1} parent=0 // pred_check_branch
    %168 = sbr.rel (0) target = $region33
  $region32: #{tpu_custom_call.1} parent=0 // pred_region
    _
  $region33: #{tpu_custom_call.1} parent=0 // pred_fallthru
    _
  // Predicated region
  $region34: #{tpu_custom_call.1} parent=0 // pred_check
    _
  $region35: #{tpu_custom_call.1} parent=0 // pred_check_branch
    %170 = sbr.rel (0) target = $region37
  $region36: #{tpu_custom_call.1} parent=0 // pred_region
    _
  $region37: #{tpu_custom_call.1} parent=0 // pred_fallthru
    _

</llo_original>
